<compile_context>
chip_gen: v5e
topology: v5e:2x2
jax: 0.10.0
libtpu: 0.0.40
codegen_flags: <defaults>
</compile_context>

<pallas_src>
import functools

import jax
import jax.numpy as jnp
from jax.experimental import pallas as pl
from jax.experimental.pallas import tpu as pltpu

LANES = 128
_MiB = 1024 * 1024


def _tpu_sizing():
    """Generation-aware (block_bytes, vmem_limit_bytes)."""
    vmem_cap = 64 * _MiB  # conservative default = v7x per-TC VMEM
    try:
        info = pltpu.get_tpu_info()
        vmem_cap = int(getattr(info, "vmem_capacity_bytes", vmem_cap))
    except Exception:
        pass
    if vmem_cap >= 64 * _MiB:
        # v5e/v6e (128 MiB VMEM) and v7x (64 MiB per TC): ~8 MiB blocks.
        # 4 pipeline buffers (in+out, double-buffered) + f32 temporaries fit
        # comfortably in a 48 MiB scoped-VMEM limit.
        return 8 * _MiB, min(48 * _MiB, (vmem_cap * 3) // 4)
    # Unknown / small-VMEM part: fall back to 4 MiB blocks.
    return 4 * _MiB, min(24 * _MiB, (vmem_cap * 3) // 4)


def _swish_kernel(x_ref, o_ref, *, approx_recip):
    # f32 compute for accuracy; swish(0) = 0, so masked/garbage tail lanes in a
    # partial block are benign (they are never written back anyway).
    xf = x_ref[...].astype(jnp.float32)
    if approx_recip:
        # Sub-f32 output: keep exp AND the reciprocal on the EUP slot; the
        # approx-reciprocal error is far below bf16/f16 resolution.
        sig = pl.reciprocal(1.0 + jnp.exp(-xf), approx=True)
    else:
        sig = jax.nn.sigmoid(xf)
    o_ref[...] = (xf * sig).astype(o_ref.dtype)


def swish(x, *, donate=False, _elem_budget=None):
    """Elementwise Swish/SiLU: x * sigmoid(x). Any shape, any float dtype."""
    orig_shape = x.shape
    dtype = x.dtype
    n = x.size
    if n == 0:
        return x

    itemsize = jnp.dtype(dtype).itemsize
    block_bytes, vmem_limit = _tpu_sizing()
    # Element budget in f32-equivalents (bounds narrow-dtype f32 temporaries).
    elem_budget = _elem_budget if _elem_budget is not None else block_bytes // 4
    # Packed-sublane granule in rows: f32 -> 8, bf16/f16 -> 16, int8/fp8 -> 32.
    sub = max(8, 32 // itemsize)
    kernel = functools.partial(_swish_kernel, approx_recip=itemsize < 4)

    if n % LANES == 0:
        # Fast path: free reshape to a lane-dense (rows, 128) slab.
        rows = n // LANES
        operand = x.reshape(rows, LANES)
        block_rows = max(sub, (elem_budget // LANES) // sub * sub)
        rows_up = pl.cdiv(rows, sub) * sub
        block_rows = min(block_rows, rows_up)
        grid = (pl.cdiv(rows, block_rows),)
        block_shape = (block_rows, LANES)
        index_map = lambda i: (i, 0)
        out_shape = jax.ShapeDtypeStruct((rows, LANES), dtype)
    else:
        # Awkward path: stream the flat array directly. No pad copy, no unpad
        # slice -- the cdiv grid's partial last block is masked by Pallas.
        operand = x.reshape(n)
        granule = sub * LANES
        budget = max(granule, (elem_budget // granule) * granule)
        # A block equal to the full array dim is always allowed, even if it is
        # not a multiple of 128; otherwise use a 128*granule-aligned block.
        block_elems = n if n <= budget else budget
        grid = (pl.cdiv(n, block_elems),)
        block_shape = (block_elems,)
        index_map = lambda i: (i,)
        out_shape = jax.ShapeDtypeStruct((n,), dtype)

    cost = pl.CostEstimate(
        flops=2 * n,
        transcendentals=n,
        bytes_accessed=2 * n * itemsize,
    )

    extra = {}
    if donate:
        # Safe only because the in/out index maps are identical (a block is
        # never read after its aliased region is overwritten); keep them in
        # lockstep if the BlockSpecs ever diverge. With the copy-free flat
        # reshape, the alias now targets the caller's (donated) buffer.
        extra["input_output_aliases"] = {0: 0}

    # TODO(synk): on v7x, confirm via xprof that the single "parallel" axis is
    # actually sharded across both TensorCores; if not, switch this axis to
    # pltpu.CORE_PARALLEL.
    y = pl.pallas_call(
        kernel,
        out_shape=out_shape,
        grid_spec=pltpu.PrefetchScalarGridSpec(
            num_scalar_prefetch=0,
            grid=grid,
            in_specs=[pl.BlockSpec(block_shape, index_map)],
            out_specs=pl.BlockSpec(block_shape, index_map),
        ),
        compiler_params=pltpu.CompilerParams(
            dimension_semantics=("parallel",),
            vmem_limit_bytes=vmem_limit,
        ),
        cost_estimate=cost,
        **extra,
    )(operand)

    return y.reshape(orig_shape)


if __name__ == "__main__":
    key = jax.random.PRNGKey(0)
    k1, k2, k3, k4, k5 = jax.random.split(key, 5)

    def ref_swish(x):
        xf = x.astype(jnp.float32)
        return (xf * jax.nn.sigmoid(xf)).astype(x.dtype)

    # 1) Typical NCHW activation, f32, numel % 128 == 0 -> zero-copy 2-D path.
    x = jax.random.normal(k1, (2, 4, 16, 16), dtype=jnp.float32)
    y = jax.block_until_ready(swish(x))
    assert y.shape == x.shape and y.dtype == x.dtype
    assert jnp.allclose(y, ref_swish(x), atol=1e-6, rtol=1e-6)

    # 2) Awkward numel (not a multiple of 128) -> flat 1-D path, no pad/slice.
    x2 = jax.random.normal(k2, (3, 5, 7, 11), dtype=jnp.float32)
    y2 = jax.block_until_ready(swish(x2))
    assert y2.shape == x2.shape and y2.dtype == x2.dtype
    assert jnp.allclose(y2, ref_swish(x2), atol=1e-6, rtol=1e-6)

    # 3) bf16 -> 16-row packed granule + EUP exp / approx-reciprocal body.
    x3 = jax.random.normal(k3, (2, 4, 16, 16), dtype=jnp.bfloat16)
    y3 = jax.block_until_ready(swish(x3))
    assert y3.shape == x3.shape and y3.dtype == jnp.bfloat16
    assert jnp.allclose(y3.astype(jnp.float32), ref_swish(x3).astype(jnp.float32),
                        atol=2e-2, rtol=2e-2)

    # 4) Force a multi-step grid + partial last block on the 2-D path.
    x4 = jax.random.normal(k4, (4, 20, 128), dtype=jnp.float32)   # rows = 80
    y4 = jax.block_until_ready(swish(x4, _elem_budget=4096))      # 32 rows/block -> grid 3
    assert jnp.allclose(y4, ref_swish(x4), atol=1e-6, rtol=1e-6)

    # 5) Force a multi-step grid + masked tail on the flat 1-D path.
    x5 = jax.random.normal(k5, (3, 10, 100), dtype=jnp.float32)   # n = 3000
    y5 = jax.block_until_ready(swish(x5, _elem_budget=1024))      # grid 3, tail = 952
    assert jnp.allclose(y5, ref_swish(x5), atol=1e-6, rtol=1e-6)

    print("KERNEL_OK")
</pallas_src>

<mosaic_0001>
module attributes {stable_mosaic.version = 11 : i64} {
  func.func @_swish_kernel(%arg0: i32, %arg1: memref<16x128xf32, #tpu.memory_space<vmem>>, %arg2: memref<16x128xf32, #tpu.memory_space<vmem>>) attributes {dimension_semantics = [#tpu.dimension_semantics<parallel>], iteration_bounds = array<i64: 1>, scalar_prefetch = 0 : i64, scratch_operands = 0 : i64, tpu.core_type = #tpu.core_type<tc>, window_params = [{transform_indices = @transform_0, window_bounds = array<i64: 16, 128>}, {transform_indices = @transform_1, window_bounds = array<i64: 16, 128>}]} {
    %c0 = arith.constant 0 : index
    %c0_0 = arith.constant 0 : index
    %0 = vector.load %arg1[%c0, %c0_0] : memref<16x128xf32, #tpu.memory_space<vmem>>, vector<16x128xf32>
    %1 = arith.negf %0 : vector<16x128xf32>
    %2 = math.exp %1 : vector<16x128xf32>
    %cst = arith.constant 1.000000e+00 : f32
    %3 = vector.broadcast %cst : f32 to vector<16x128xf32>
    %4 = arith.addf %3, %2 : vector<16x128xf32>
    %5 = arith.divf %3, %4 : vector<16x128xf32>
    %6 = arith.mulf %0, %5 : vector<16x128xf32>
    %c0_1 = arith.constant 0 : index
    %c0_2 = arith.constant 0 : index
    %7 = vector.load %arg2[%c0_1, %c0_2] : memref<16x128xf32, #tpu.memory_space<vmem>>, vector<16x128xf32>
    tpu.vector_store %arg2[%c0_1, %c0_2], %6 {strides = array<i32>} : memref<16x128xf32, #tpu.memory_space<vmem>>, vector<16x128xf32>,
    return
  }
  func.func @transform_0(%arg0: i32) -> (i32, i32) {
    %c0_i32 = arith.constant 0 : i32
    %c0_i32_0 = arith.constant 0 : i32
    return %arg0, %c0_i32 : i32, i32
  }
  func.func @transform_1(%arg0: i32) -> (i32, i32) {
    %c0_i32 = arith.constant 0 : i32
    %c0_i32_0 = arith.constant 0 : i32
    return %arg0, %c0_i32 : i32, i32
  }
}

</mosaic_0001>

<llo_original>
// kernel: tpu_custom_call.1
$region0: #{tpu_custom_call.1}
  #allocation0 [shape = 'u32[]', space=smem, size = 0x4, offset = 0x4, fixed_abs, tag = 'smem constant byte address 0x4 - core index']
  #allocation1 [shape = 'u32[72,128]{1,0:T(1,128)}', space=vmem, size = 0x9000, scoped, tag = 'internal scratch']
  %s0 = inlined_call_operand.hbm [shape: f32[16,128], index: 0, kind: input, shape index: {}]
  %s1 = inlined_call_operand.hbm [shape: f32[16,128], index: 1, kind: output, shape index: {}]
  %s2 = sld [smem:[#allocation0]]
  $region18: #{tpu_custom_call.1} parent=0
    _
  %s4 = ssub.s32 1, %s2
  %s5 = scalar_select 0, %s4, %s2
  $region1: #{tpu_custom_call.1} parent=0
    #allocation2 [shape = 'u8[8192]{0}', space=vmem, size = 0x2000, scoped, tag = 'input window, operand 0, single buffered']
    #allocation3 [shape = 's32[1]{0}', space=sflag, size = 0x4, scoped, tag = 'scoped memory for tpu_custom_call.1']
    #allocation4 [shape = 's32[1]{0}', space=sflag, size = 0x4, scoped, tag = 'scoped memory for tpu_custom_call.1']
    #allocation5 [shape = 'u8[8192]{0}', space=vmem, size = 0x2000, scoped, tag = 'output window, operand 0, single buffered']
    %6 = vsyncpa [#allocation3], 0
    %7 = vsyncpa [#allocation4], 0
    // Predicated region
    $region2: #{tpu_custom_call.1} parent=1 // pred_check
      _
    $region3: #{tpu_custom_call.1} parent=1 // pred_check_branch
      %9 = sbr.rel (0) target = $region5
    $region4: #{tpu_custom_call.1} parent=1 // pred_region
      %11 = vsyncadd [#allocation3], 0
      %s12 = sshll.u32 %s0, 4
      %s13 = int_to_ptr.hbm [resolvable:$true] %s12
      %s14 = sshll.u32 [#allocation2], 4
      %s15 = int_to_ptr.vmem [resolvable:$true] %s14
      %20 = dma.hbm_to_vmem [thread:$0]  %s13, 256, %s15, [#allocation3], 128, 128, 8
    $region5: #{tpu_custom_call.1} parent=1 // pred_fallthru
      _
    // Predicated region
    $region6: #{tpu_custom_call.1} parent=1 // pred_check
      _
    $region7: #{tpu_custom_call.1} parent=1 // pred_check_branch
      %22 = sbr.rel (0) target = $region9
    $region8: #{tpu_custom_call.1} parent=1 // pred_region
      %24 = dma.done [#allocation3], 256
    $region9: #{tpu_custom_call.1} parent=1 // pred_fallthru
      _
    %v25 = vld [vmem:[#allocation2] sm:$0xff]
    %v26 = vld [vmem:[#allocation2 + $0x8] sm:$0xff]
    %v27 = vxor.u32 %v25, 2147483648
    %v28 = vxor.u32 %v26, 2147483648
    %v29 = vmul.f32 %v27, 1.442695
    %v30 = vpow.pop %v29
    %v31 = vmul.f32 %v28, 1.442695
    %v32 = vpow.pop %v31
    %v33 = vadd.f32 %v30, 1.0
    %v34 = vadd.f32 %v32, 1.0
    %v35 = vrcp.pop %v33
    %v36 = vmul.f32 %v33, %v35
    %v37 = vsub.f32 1.0, %v36
    %v38 = vmul.f32 %v35, %v37
    %v39 = vadd.f32 %v35, %v38
    %vm40 = vweird.f32 %v33
    %vm41 = vweird.f32 %v35
    %vm42 = vmor %vm40, %vm41
    %v43 = vsel %vm42, %v35, %v39
    %v44 = vand.u32 2147483647, %v33
    %vm45 = vcmp.eq.f32.partialorder %v44, 8.507059e+37
    %v46 = vand.u32 %v33, 2147483648
    %v47 = vor.u32 1.1754944e-38, %v46
    %v48 = vsel %vm45, %v47, %v43
    %v49 = vmul.f32 1.0, %v48
    %v50 = vrcp.pop %v34
    %v51 = vmul.f32 %v34, %v50
    %v52 = vsub.f32 1.0, %v51
    %v53 = vmul.f32 %v50, %v52
    %v54 = vadd.f32 %v50, %v53
    %vm55 = vweird.f32 %v34
    %vm56 = vweird.f32 %v50
    %vm57 = vmor %vm55, %vm56
    %v58 = vsel %vm57, %v50, %v54
    %v59 = vand.u32 2147483647, %v34
    %vm60 = vcmp.eq.f32.partialorder %v59, 8.507059e+37
    %v61 = vand.u32 %v34, 2147483648
    %v62 = vor.u32 1.1754944e-38, %v61
    %v63 = vsel %vm60, %v62, %v58
    %v64 = vmul.f32 1.0, %v63
    %v65 = vmul.f32 %v25, %v49
    %v66 = vmul.f32 %v26, %v64
    %67 = vst [vmem:[#allocation5] sm:$0xff] %v65
    %68 = vst [vmem:[#allocation5 + $0x8] sm:$0xff] %v66
    // Predicated region
    $region10: #{tpu_custom_call.1} parent=1 // pred_check
      _
    $region11: #{tpu_custom_call.1} parent=1 // pred_check_branch
      %70 = sbr.rel (0) target = $region13
    $region12: #{tpu_custom_call.1} parent=1 // pred_region
      %72 = vsyncadd [#allocation4], 0
      %s73 = sshll.u32 [#allocation5], 4
      %s74 = int_to_ptr.vmem [resolvable:$true] %s73
      %s75 = sshll.u32 %s1, 4
      %s76 = int_to_ptr.hbm [resolvable:$true] %s75
      %81 = dma.vmem_to_hbm [thread:$0]  %s74, 256, %s76, [#allocation4], 128, 128, 8
    $region13: #{tpu_custom_call.1} parent=1 // pred_fallthru
      _
    // Predicated region
    $region14: #{tpu_custom_call.1} parent=1 // pred_check
      _
    $region15: #{tpu_custom_call.1} parent=1 // pred_check_branch
      %83 = sbr.rel (0) target = $region17
    $region16: #{tpu_custom_call.1} parent=1 // pred_region
      %85 = dma.done [#allocation4], 256
    $region17: #{tpu_custom_call.1} parent=1 // pred_fallthru
      _
    %86 = vsyncpa [#allocation3], 1
    %87 = vsyncpa [#allocation4], 1

</llo_original>
